<compile_context>
chip_gen: v5e
topology: v5e:2x2
jax: 0.10.0
libtpu: 0.0.40
codegen_flags: <defaults>
</compile_context>

<pallas_src>
import math
import jax
import jax.numpy as jnp
from jax.experimental import pallas as pl
from jax.experimental.pallas import tpu as pltpu

HIDDEN = 32
HEADS = 4
HEAD_DIM = HIDDEN // HEADS
BATCH = 2
SEQ = 8
INSTR_SEQ = 8
SCALE = 1.0 / math.sqrt(HEAD_DIM)

# approx=True uses the EUP vrcp slot; flip to False if downstream tolerance tightens.
USE_APPROX_RECIPROCAL = True


def _recip(x):
    return pl.reciprocal(x, approx=True) if USE_APPROX_RECIPROCAL else 1.0 / x


# ------------------------------ Pallas kernel -------------------------------

def _fused_attn_kernel(hid_ref, inst_ref, slab_ref, mask_ref, gate_ref, o_ref):
    """One invocation: fused (adaptor-folded) projections + gated instruct attention for
    every batch and head, lane-dense [B, S, H] output."""
    B, S, H = hid_ref.shape
    Si = inst_ref.shape[1]
    Sk = S + Si
    nh, d = HEADS, HEAD_DIM

    # Flatten (B, S) rows so each projection is one wide MXU matmul.
    x = hid_ref[...].reshape(B * S, H)           # (16, 32)
    xi = inst_ref[...].reshape(B * Si, H)        # (16, 32)

    # Parameter slab layout (rows): [0:H]   hidden  weights [Wk | Wv | Wq*SCALE]
    #                               [H:2H]  instruct weights [Wa@Wk | Wa@Wv | 0]
    #                               [2H]    hidden  bias, [2H+8] instruct bias.
    kvq_h = (jnp.dot(x, slab_ref[0:H, :], preferred_element_type=jnp.float32)
             + slab_ref[2 * H:2 * H + 1, :])                     # (16, 96)
    kvq_i = (jnp.dot(xi, slab_ref[H:2 * H, :], preferred_element_type=jnp.float32)
             + slab_ref[2 * H + 8:2 * H + 9, :])                 # (16, 96)

    # Concatenate the two K/V streams once along the sequence (sublane) axis.
    # Column layout [K | V | Qscaled]; instruct rows carry exact zeros in the Q block.
    allc = jnp.concatenate(
        [kvq_h.reshape(B, S, 3 * H), kvq_i.reshape(B, Si, 3 * H)], axis=1)  # (B, Sk, 3H)

    # Packed additive mask over the concatenated key axis (broadcast hoisted out of loop).
    mask = jnp.broadcast_to(mask_ref[...], (B, S, Sk))
    seg_main = jax.lax.broadcasted_iota(jnp.int32, (B, S, Sk), 2) < S
    neg = jnp.float32(-1e30)

    cols = []
    for h in range(nh):                          # static unroll over 4 heads
        q = allc[:, :S, 2 * H + h * d: 2 * H + (h + 1) * d]      # (B, S, d), pre-scaled
        k = allc[:, :, h * d: (h + 1) * d]                       # (B, Sk, d)
        v = allc[:, :, H + h * d: H + (h + 1) * d]               # (B, Sk, d)

        # One score matmul per head over main + instruct keys.
        s = jnp.einsum('bqd,bkd->bqk', q, k,
                       preferred_element_type=jnp.float32) + mask

        # Two segment softmaxes (main / instruct keys) on the fused tensor via lane
        # selects; tanh(gate) folds into the instruct-segment normalization.
        m0 = jnp.max(jnp.where(seg_main, s, neg), axis=-1, keepdims=True)
        m1 = jnp.max(jnp.where(seg_main, neg, s), axis=-1, keepdims=True)
        e = jnp.exp(s - jnp.where(seg_main, m0, m1))
        l0 = jnp.sum(jnp.where(seg_main, e, 0.0), axis=-1, keepdims=True)
        l1 = jnp.sum(jnp.where(seg_main, 0.0, e), axis=-1, keepdims=True)
        r_ins = gate_ref[h] * _recip(l1)         # per-head tanh(gate) scalar from SMEM
        p = e * jnp.where(seg_main, _recip(l0), r_ins)

        # Single fused probs @ [V ; instruct V] matmul == ctx + tanh(gate) * instruct_ctx.
        cols.append(jnp.einsum('bqk,bkd->bqd', p, v,
                               preferred_element_type=jnp.float32))

    # context_layer.permute(0,2,1,3).reshape(B, S, all_head_size) done in-kernel:
    # heads concatenated along lanes, one lane-dense [B, S, H] store.
    o_ref[...] = jnp.concatenate(cols, axis=-1)


# -------------------------------- Wrapper ------------------------------------

def prepare_params(params):
    """One-time host-side weight fusion (outside the per-call hot path)."""
    H = HIDDEN
    wq_s = params["wq"] * SCALE
    bq_s = params["bq"] * SCALE

    # Hidden-stream projection, column order [K | V | Qscaled].
    w_h = jnp.concatenate([params["wk"], params["wv"], wq_s], axis=1)            # (H, 3H)
    b_h = jnp.concatenate([params["bk"], params["bv"], bq_s])                    # (3H,)

    # Instruct-stream projection with proj_adaptor folded in (K/V only; Q cols zero).
    wk_i = params["wa"] @ params["wk"]
    wv_i = params["wa"] @ params["wv"]
    bk_i = params["ba"] @ params["wk"] + params["bk"]
    bv_i = params["ba"] @ params["wv"] + params["bv"]
    w_i = jnp.concatenate([wk_i, wv_i, jnp.zeros((H, H), jnp.float32)], axis=1)  # (H, 3H)
    b_i = jnp.concatenate([bk_i, bv_i, jnp.zeros((H,), jnp.float32)])            # (3H,)

    # Single parameter slab (one DMA), sublane-aligned segments.
    R = 2 * H + 16
    slab = jnp.zeros((R, 3 * H), jnp.float32)
    slab = slab.at[0:H].set(w_h)
    slab = slab.at[H:2 * H].set(w_i)
    slab = slab.at[2 * H].set(b_h)
    slab = slab.at[2 * H + 8].set(b_i)

    return {
        "slab": slab,
        # tanh(gate) precomputed once (4 scalars); identical forward semantics.
        "gate_tanh": jnp.tanh(params["gate"]).astype(jnp.float32),
    }


def instruct_bert_self_attention(hidden, instruct_hidden, attn_mask, instr_mask, fused):
    """hidden: [B,S,H]; instruct_hidden: [B,Si,H]; masks: additive [B,1,S]/[B,1,Si]."""
    B, S, H = hidden.shape
    Si = instruct_hidden.shape[1]
    slab = fused["slab"]
    R = slab.shape[0]

    # Pack the two additive masks into one array matching the in-kernel key concat.
    mask_cat = jnp.concatenate([attn_mask, instr_mask], axis=-1)    # (B, 1, S+Si)

    return pl.pallas_call(
        _fused_attn_kernel,
        out_shape=jax.ShapeDtypeStruct((B, S, H), jnp.float32),
        grid=(1,),
        in_specs=[
            pl.BlockSpec((B, S, H), lambda i: (0, 0, 0)),          # hidden
            pl.BlockSpec((B, Si, H), lambda i: (0, 0, 0)),         # instruct hidden (raw)
            pl.BlockSpec((R, 3 * H), lambda i: (0, 0)),            # packed param slab
            pl.BlockSpec((B, 1, S + Si), lambda i: (0, 0, 0)),     # packed additive masks
            pl.BlockSpec(memory_space=pltpu.MemorySpace.SMEM),     # tanh(gate) scalars
        ],
        out_specs=pl.BlockSpec((B, S, H), lambda i: (0, 0, 0)),
        compiler_params=pltpu.CompilerParams(
            dimension_semantics=("arbitrary",)),
    )(hidden, instruct_hidden, slab, mask_cat, fused["gate_tanh"])


# --------------------------- Plain-JAX reference ----------------------------

def reference(hidden, instruct_hidden, attn_mask, instr_mask, params):
    B, S, H = hidden.shape
    nh, d = HEADS, HEAD_DIM

    xi = instruct_hidden @ params["wa"] + params["ba"]

    def split(x):
        return x.reshape(x.shape[0], x.shape[1], nh, d).transpose(0, 2, 1, 3)

    q = split(hidden @ params["wq"] + params["bq"])
    k = split(hidden @ params["wk"] + params["bk"])
    v = split(hidden @ params["wv"] + params["bv"])
    ik = split(xi @ params["wk"] + params["bk"])
    iv = split(xi @ params["wv"] + params["bv"])

    scores = jnp.einsum("bhqd,bhkd->bhqk", q, k) * SCALE + attn_mask[:, None, :, :]
    ctx = jnp.einsum("bhqk,bhkd->bhqd", jax.nn.softmax(scores, axis=-1), v)

    iscores = jnp.einsum("bhqd,bhkd->bhqk", q, ik) * SCALE + instr_mask[:, None, :, :]
    ictx = jnp.einsum("bhqk,bhkd->bhqd", jax.nn.softmax(iscores, axis=-1), iv)

    gate = jnp.tanh(params["gate"]).reshape(1, nh, 1, 1)
    ctx = ctx + gate * ictx
    return ctx.transpose(0, 2, 1, 3).reshape(B, S, H)


# ---------------------------------- Main -------------------------------------

if __name__ == "__main__":
    key = jax.random.PRNGKey(0)
    ks = jax.random.split(key, 12)

    params = {
        "wq": 0.05 * jax.random.normal(ks[0], (HIDDEN, HIDDEN), jnp.float32),
        "bq": 0.05 * jax.random.normal(ks[1], (HIDDEN,), jnp.float32),
        "wk": 0.05 * jax.random.normal(ks[2], (HIDDEN, HIDDEN), jnp.float32),
        "bk": 0.05 * jax.random.normal(ks[3], (HIDDEN,), jnp.float32),
        "wv": 0.05 * jax.random.normal(ks[4], (HIDDEN, HIDDEN), jnp.float32),
        "bv": 0.05 * jax.random.normal(ks[5], (HIDDEN,), jnp.float32),
        "wa": 0.05 * jax.random.normal(ks[6], (HIDDEN, HIDDEN), jnp.float32),
        "ba": 0.05 * jax.random.normal(ks[7], (HIDDEN,), jnp.float32),
        # torch __init__ zero-inits the gate; use nonzero values to exercise the branch
        "gate": 0.5 * jax.random.normal(ks[8], (HEADS,), jnp.float32),
    }

    hidden = jax.random.normal(ks[9], (BATCH, SEQ, HIDDEN), jnp.float32)
    instruct_hidden = jax.random.normal(ks[10], (BATCH, INSTR_SEQ, HIDDEN), jnp.float32)

    # additive masks (0 for valid, -1e4 for padded), HF-style [B, 1, S_kv]
    valid = jnp.ones((BATCH, SEQ), jnp.float32).at[1, 6:].set(0.0)
    ivalid = jnp.ones((BATCH, INSTR_SEQ), jnp.float32).at[0, 5:].set(0.0)
    attn_mask = ((1.0 - valid) * -1e4).reshape(BATCH, 1, SEQ)
    instr_mask = ((1.0 - ivalid) * -1e4).reshape(BATCH, 1, INSTR_SEQ)

    # TODO(synk): attention_probs dropout is identity (eval mode); training-mode stochastic
    # dropout, relative position embeddings, and the decoder/cross-attn cache paths are not
    # exercised by this config and are not modelled.

    fused = prepare_params(params)   # one-time weight fusion (outside per-call hot path)

    out = instruct_bert_self_attention(hidden, instruct_hidden, attn_mask, instr_mask, fused)
    out = jax.block_until_ready(out)

    ref = reference(hidden, instruct_hidden, attn_mask, instr_mask, params)
    assert out.shape == (BATCH, SEQ, HIDDEN)
    assert jnp.allclose(out, ref, atol=5e-3, rtol=5e-3), "mismatch vs reference"

    print("KERNEL_OK")
</pallas_src>

<mosaic_0001>
module attributes {stable_mosaic.version = 11 : i64} {
  func.func @_fused_attn_kernel(%arg0: i32, %arg1: memref<2x8x32xf32, #tpu.memory_space<vmem>>, %arg2: memref<2x8x32xf32, #tpu.memory_space<vmem>>, %arg3: memref<80x96xf32, #tpu.memory_space<vmem>>, %arg4: memref<2x1x16xf32, #tpu.memory_space<vmem>>, %arg5: memref<4xf32, #tpu.memory_space<smem>>, %arg6: memref<2x8x32xf32, #tpu.memory_space<vmem>>) attributes {dimension_semantics = [#tpu.dimension_semantics<arbitrary>], iteration_bounds = array<i64: 1>, scalar_prefetch = 0 : i64, scratch_operands = 0 : i64, tpu.core_type = #tpu.core_type<tc>, window_params = [{pipeline_mode = #tpu.pipeline_mode<synchronous>, transform_indices = @transform_0, window_bounds = array<i64: 2, 8, 32>}, {pipeline_mode = #tpu.pipeline_mode<synchronous>, transform_indices = @transform_1, window_bounds = array<i64: 2, 8, 32>}, {pipeline_mode = #tpu.pipeline_mode<synchronous>, transform_indices = @transform_2, window_bounds = array<i64: 80, 96>}, {pipeline_mode = #tpu.pipeline_mode<synchronous>, transform_indices = @transform_3, window_bounds = array<i64: 2, 1, 16>}, {transform_indices = @transform_4, window_bounds = array<i64: 4>}, {pipeline_mode = #tpu.pipeline_mode<synchronous>, transform_indices = @transform_5, window_bounds = array<i64: 2, 8, 32>}]} {
    %c0 = arith.constant 0 : index
    %c0_0 = arith.constant 0 : index
    %c0_1 = arith.constant 0 : index
    %0 = vector.load %arg1[%c0, %c0_0, %c0_1] : memref<2x8x32xf32, #tpu.memory_space<vmem>>, vector<2x8x32xf32>
    %1 = vector.shape_cast %0 : vector<2x8x32xf32> to vector<16x32xf32>
    %c0_2 = arith.constant 0 : index
    %c0_3 = arith.constant 0 : index
    %c0_4 = arith.constant 0 : index
    %2 = vector.load %arg2[%c0_2, %c0_3, %c0_4] : memref<2x8x32xf32, #tpu.memory_space<vmem>>, vector<2x8x32xf32>
    %3 = vector.shape_cast %2 : vector<2x8x32xf32> to vector<16x32xf32>
    %c0_5 = arith.constant 0 : index
    %c0_6 = arith.constant 0 : index
    %4 = vector.load %arg3[%c0_5, %c0_6] : memref<80x96xf32, #tpu.memory_space<vmem>>, vector<32x96xf32>
    %cst = arith.constant dense<0.000000e+00> : vector<16x96xf32>
    %5 = tpu.matmul %1, %4, %cst {dimension_numbers = #tpu.dot_dimension_numbers<[1], [0], [0], [1], [0, 0, 1, 1], [], []>} : vector<16x32xf32>, vector<32x96xf32>, vector<16x96xf32> -> vector<16x96xf32>
    %c64 = arith.constant 64 : index
    %c0_7 = arith.constant 0 : index
    %6 = vector.load %arg3[%c64, %c0_7] : memref<80x96xf32, #tpu.memory_space<vmem>>, vector<1x96xf32>
    %7 = vector.broadcast %6 : vector<1x96xf32> to vector<16x96xf32>
    %8 = arith.addf %5, %7 : vector<16x96xf32>
    %c32 = arith.constant 32 : index
    %c0_8 = arith.constant 0 : index
    %9 = vector.load %arg3[%c32, %c0_8] : memref<80x96xf32, #tpu.memory_space<vmem>>, vector<32x96xf32>
    %cst_9 = arith.constant dense<0.000000e+00> : vector<16x96xf32>
    %10 = tpu.matmul %3, %9, %cst_9 {dimension_numbers = #tpu.dot_dimension_numbers<[1], [0], [0], [1], [0, 0, 1, 1], [], []>} : vector<16x32xf32>, vector<32x96xf32>, vector<16x96xf32> -> vector<16x96xf32>
    %c72 = arith.constant 72 : index
    %c0_10 = arith.constant 0 : index
    %11 = vector.load %arg3[%c72, %c0_10] : memref<80x96xf32, #tpu.memory_space<vmem>>, vector<1x96xf32>
    %12 = vector.broadcast %11 : vector<1x96xf32> to vector<16x96xf32>
    %13 = arith.addf %10, %12 : vector<16x96xf32>
    %14 = vector.shape_cast %8 : vector<16x96xf32> to vector<2x8x96xf32>
    %15 = vector.shape_cast %13 : vector<16x96xf32> to vector<2x8x96xf32>
    %16 = tpu.concatenate %14, %15 in 1 : vector<2x8x96xf32>, vector<2x8x96xf32> -> vector<2x16x96xf32>
    %c0_11 = arith.constant 0 : index
    %c0_12 = arith.constant 0 : index
    %c0_13 = arith.constant 0 : index
    %17 = vector.load %arg4[%c0_11, %c0_12, %c0_13] : memref<2x1x16xf32, #tpu.memory_space<vmem>>, vector<2x1x16xf32>
    %18 = vector.shape_cast %17 : vector<2x1x16xf32> to vector<2x1x16xf32>
    %19 = vector.broadcast %18 : vector<2x1x16xf32> to vector<2x8x16xf32>
    %20 = tpu.iota {dimensions = array<i32: 2>} : vector<2x8x16xi32>
    %c8_i32 = arith.constant 8 : i32
    %21 = vector.broadcast %c8_i32 : i32 to vector<2x8x16xi32>
    %22 = arith.cmpi slt, %20, %21 : vector<2x8x16xi32>
    %23 = vector.extract_strided_slice %16 {offsets = [0, 0, 64], sizes = [2, 8, 8], strides = [1, 1, 1]} : vector<2x16x96xf32> to vector<2x8x8xf32>
    %24 = vector.extract_strided_slice %16 {offsets = [0, 0, 0], sizes = [2, 16, 8], strides = [1, 1, 1]} : vector<2x16x96xf32> to vector<2x16x8xf32>
    %25 = vector.extract_strided_slice %16 {offsets = [0, 0, 32], sizes = [2, 16, 8], strides = [1, 1, 1]} : vector<2x16x96xf32> to vector<2x16x8xf32>
    "tpu.trace_start"() <{level = 10 : i32, message = "bqd,bkd->bqk"}> : () -> ()
    %cst_14 = arith.constant dense<0.000000e+00> : vector<2x8x16xf32>
    %26 = tpu.matmul %23, %24, %cst_14 {dimension_numbers = #tpu.dot_dimension_numbers<[2], [2], [1], [1], [0, 0, 0, 1, 1, 1], [0], [0]>} : vector<2x8x8xf32>, vector<2x16x8xf32>, vector<2x8x16xf32> -> vector<2x8x16xf32>
    "tpu.trace_stop"() : () -> ()
    %27 = arith.addf %26, %19 : vector<2x8x16xf32>
    %cst_15 = arith.constant -1.000000e+30 : f32
    %28 = vector.broadcast %cst_15 : f32 to vector<2x8x16xf32>
    %29 = arith.select %22, %27, %28 : vector<2x8x16xi1>, vector<2x8x16xf32>
    %cst_16 = arith.constant dense<0xFF800000> : vector<2x8xf32>
    %30 = vector.multi_reduction <maximumf>, %29, %cst_16 [2] : vector<2x8x16xf32> to vector<2x8xf32>
    %31 = vector.shape_cast %30 : vector<2x8xf32> to vector<2x8x1xf32>
    %cst_17 = arith.constant -1.000000e+30 : f32
    %32 = vector.broadcast %cst_17 : f32 to vector<2x8x16xf32>
    %33 = arith.select %22, %32, %27 : vector<2x8x16xi1>, vector<2x8x16xf32>
    %cst_18 = arith.constant dense<0xFF800000> : vector<2x8xf32>
    %34 = vector.multi_reduction <maximumf>, %33, %cst_18 [2] : vector<2x8x16xf32> to vector<2x8xf32>
    %35 = vector.shape_cast %34 : vector<2x8xf32> to vector<2x8x1xf32>
    %36 = vector.shape_cast %31 : vector<2x8x1xf32> to vector<2x8x1xf32>
    %37 = vector.broadcast %36 : vector<2x8x1xf32> to vector<2x8x16xf32>
    %38 = vector.shape_cast %35 : vector<2x8x1xf32> to vector<2x8x1xf32>
    %39 = vector.broadcast %38 : vector<2x8x1xf32> to vector<2x8x16xf32>
    %40 = arith.select %22, %37, %39 : vector<2x8x16xi1>, vector<2x8x16xf32>
    %41 = arith.subf %27, %40 : vector<2x8x16xf32>
    %42 = math.exp %41 : vector<2x8x16xf32>
    %cst_19 = arith.constant 0.000000e+00 : f32
    %43 = vector.broadcast %cst_19 : f32 to vector<2x8x16xf32>
    %44 = arith.select %22, %42, %43 : vector<2x8x16xi1>, vector<2x8x16xf32>
    %cst_20 = arith.constant dense<0.000000e+00> : vector<2x8xf32>
    %45 = vector.multi_reduction <add>, %44, %cst_20 [2] : vector<2x8x16xf32> to vector<2x8xf32>
    %46 = vector.shape_cast %45 : vector<2x8xf32> to vector<2x8x1xf32>
    %cst_21 = arith.constant 0.000000e+00 : f32
    %47 = vector.broadcast %cst_21 : f32 to vector<2x8x16xf32>
    %48 = arith.select %22, %47, %42 : vector<2x8x16xi1>, vector<2x8x16xf32>
    %cst_22 = arith.constant dense<0.000000e+00> : vector<2x8xf32>
    %49 = vector.multi_reduction <add>, %48, %cst_22 [2] : vector<2x8x16xf32> to vector<2x8xf32>
    %50 = vector.shape_cast %49 : vector<2x8xf32> to vector<2x8x1xf32>
    %c0_23 = arith.constant 0 : index
    %51 = memref.load %arg5[%c0_23] : memref<4xf32, #tpu.memory_space<smem>>
    %52 = tpu.reciprocal %50 {approx = true} : vector<2x8x1xf32> -> vector<2x8x1xf32>
    %53 = vector.broadcast %51 : f32 to vector<2x8x1xf32>
    %54 = arith.mulf %53, %52 : vector<2x8x1xf32>
    %55 = tpu.reciprocal %46 {approx = true} : vector<2x8x1xf32> -> vector<2x8x1xf32>
    %56 = vector.shape_cast %55 : vector<2x8x1xf32> to vector<2x8x1xf32>
    %57 = vector.broadcast %56 : vector<2x8x1xf32> to vector<2x8x16xf32>
    %58 = vector.shape_cast %54 : vector<2x8x1xf32> to vector<2x8x1xf32>
    %59 = vector.broadcast %58 : vector<2x8x1xf32> to vector<2x8x16xf32>
    %60 = arith.select %22, %57, %59 : vector<2x8x16xi1>, vector<2x8x16xf32>
    %61 = arith.mulf %42, %60 : vector<2x8x16xf32>
    "tpu.trace_start"() <{level = 10 : i32, message = "bqk,bkd->bqd"}> : () -> ()
    %cst_24 = arith.constant dense<0.000000e+00> : vector<2x8x8xf32>
    %62 = tpu.matmul %61, %25, %cst_24 {dimension_numbers = #tpu.dot_dimension_numbers<[2], [1], [1], [2], [0, 0, 0, 1, 1, 2], [0], [0]>} : vector<2x8x16xf32>, vector<2x16x8xf32>, vector<2x8x8xf32> -> vector<2x8x8xf32>
    "tpu.trace_stop"() : () -> ()
    %63 = vector.extract_strided_slice %16 {offsets = [0, 0, 72], sizes = [2, 8, 8], strides = [1, 1, 1]} : vector<2x16x96xf32> to vector<2x8x8xf32>
    %64 = vector.extract_strided_slice %16 {offsets = [0, 0, 8], sizes = [2, 16, 8], strides = [1, 1, 1]} : vector<2x16x96xf32> to vector<2x16x8xf32>
    %65 = vector.extract_strided_slice %16 {offsets = [0, 0, 40], sizes = [2, 16, 8], strides = [1, 1, 1]} : vector<2x16x96xf32> to vector<2x16x8xf32>
    "tpu.trace_start"() <{level = 10 : i32, message = "bqd,bkd->bqk"}> : () -> ()
    %cst_25 = arith.constant dense<0.000000e+00> : vector<2x8x16xf32>
    %66 = tpu.matmul %63, %64, %cst_25 {dimension_numbers = #tpu.dot_dimension_numbers<[2], [2], [1], [1], [0, 0, 0, 1, 1, 1], [0], [0]>} : vector<2x8x8xf32>, vector<2x16x8xf32>, vector<2x8x16xf32> -> vector<2x8x16xf32>
    "tpu.trace_stop"() : () -> ()
    %67 = arith.addf %66, %19 : vector<2x8x16xf32>
    %cst_26 = arith.constant -1.000000e+30 : f32
    %68 = vector.broadcast %cst_26 : f32 to vector<2x8x16xf32>
    %69 = arith.select %22, %67, %68 : vector<2x8x16xi1>, vector<2x8x16xf32>
    %cst_27 = arith.constant dense<0xFF800000> : vector<2x8xf32>
    %70 = vector.multi_reduction <maximumf>, %69, %cst_27 [2] : vector<2x8x16xf32> to vector<2x8xf32>
    %71 = vector.shape_cast %70 : vector<2x8xf32> to vector<2x8x1xf32>
    %cst_28 = arith.constant -1.000000e+30 : f32
    %72 = vector.broadcast %cst_28 : f32 to vector<2x8x16xf32>
    %73 = arith.select %22, %72, %67 : vector<2x8x16xi1>, vector<2x8x16xf32>
    %cst_29 = arith.constant dense<0xFF800000> : vector<2x8xf32>
    %74 = vector.multi_reduction <maximumf>, %73, %cst_29 [2] : vector<2x8x16xf32> to vector<2x8xf32>
    %75 = vector.shape_cast %74 : vector<2x8xf32> to vector<2x8x1xf32>
    %76 = vector.shape_cast %71 : vector<2x8x1xf32> to vector<2x8x1xf32>
    %77 = vector.broadcast %76 : vector<2x8x1xf32> to vector<2x8x16xf32>
    %78 = vector.shape_cast %75 : vector<2x8x1xf32> to vector<2x8x1xf32>
    %79 = vector.broadcast %78 : vector<2x8x1xf32> to vector<2x8x16xf32>
    %80 = arith.select %22, %77, %79 : vector<2x8x16xi1>, vector<2x8x16xf32>
    %81 = arith.subf %67, %80 : vector<2x8x16xf32>
    %82 = math.exp %81 : vector<2x8x16xf32>
    %cst_30 = arith.constant 0.000000e+00 : f32
    %83 = vector.broadcast %cst_30 : f32 to vector<2x8x16xf32>
    %84 = arith.select %22, %82, %83 : vector<2x8x16xi1>, vector<2x8x16xf32>
    %cst_31 = arith.constant dense<0.000000e+00> : vector<2x8xf32>
    %85 = vector.multi_reduction <add>, %84, %cst_31 [2] : vector<2x8x16xf32> to vector<2x8xf32>
    %86 = vector.shape_cast %85 : vector<2x8xf32> to vector<2x8x1xf32>
    %cst_32 = arith.constant 0.000000e+00 : f32
    %87 = vector.broadcast %cst_32 : f32 to vector<2x8x16xf32>
    %88 = arith.select %22, %87, %82 : vector<2x8x16xi1>, vector<2x8x16xf32>
    %cst_33 = arith.constant dense<0.000000e+00> : vector<2x8xf32>
    %89 = vector.multi_reduction <add>, %88, %cst_33 [2] : vector<2x8x16xf32> to vector<2x8xf32>
    %90 = vector.shape_cast %89 : vector<2x8xf32> to vector<2x8x1xf32>
    %c1 = arith.constant 1 : index
    %91 = memref.load %arg5[%c1] : memref<4xf32, #tpu.memory_space<smem>>
    %92 = tpu.reciprocal %90 {approx = true} : vector<2x8x1xf32> -> vector<2x8x1xf32>
    %93 = vector.broadcast %91 : f32 to vector<2x8x1xf32>
    %94 = arith.mulf %93, %92 : vector<2x8x1xf32>
    %95 = tpu.reciprocal %86 {approx = true} : vector<2x8x1xf32> -> vector<2x8x1xf32>
    %96 = vector.shape_cast %95 : vector<2x8x1xf32> to vector<2x8x1xf32>
    %97 = vector.broadcast %96 : vector<2x8x1xf32> to vector<2x8x16xf32>
    %98 = vector.shape_cast %94 : vector<2x8x1xf32> to vector<2x8x1xf32>
    %99 = vector.broadcast %98 : vector<2x8x1xf32> to vector<2x8x16xf32>
    %100 = arith.select %22, %97, %99 : vector<2x8x16xi1>, vector<2x8x16xf32>
    %101 = arith.mulf %82, %100 : vector<2x8x16xf32>
    "tpu.trace_start"() <{level = 10 : i32, message = "bqk,bkd->bqd"}> : () -> ()
    %cst_34 = arith.constant dense<0.000000e+00> : vector<2x8x8xf32>
    %102 = tpu.matmul %101, %65, %cst_34 {dimension_numbers = #tpu.dot_dimension_numbers<[2], [1], [1], [2], [0, 0, 0, 1, 1, 2], [0], [0]>} : vector<2x8x16xf32>, vector<2x16x8xf32>, vector<2x8x8xf32> -> vector<2x8x8xf32>
    "tpu.trace_stop"() : () -> ()
    %103 = vector.extract_strided_slice %16 {offsets = [0, 0, 80], sizes = [2, 8, 8], strides = [1, 1, 1]} : vector<2x16x96xf32> to vector<2x8x8xf32>
    %104 = vector.extract_strided_slice %16 {offsets = [0, 0, 16], sizes = [2, 16, 8], strides = [1, 1, 1]} : vector<2x16x96xf32> to vector<2x16x8xf32>
    %105 = vector.extract_strided_slice %16 {offsets = [0, 0, 48], sizes = [2, 16, 8], strides = [1, 1, 1]} : vector<2x16x96xf32> to vector<2x16x8xf32>
    "tpu.trace_start"() <{level = 10 : i32, message = "bqd,bkd->bqk"}> : () -> ()
    %cst_35 = arith.constant dense<0.000000e+00> : vector<2x8x16xf32>
    %106 = tpu.matmul %103, %104, %cst_35 {dimension_numbers = #tpu.dot_dimension_numbers<[2], [2], [1], [1], [0, 0, 0, 1, 1, 1], [0], [0]>} : vector<2x8x8xf32>, vector<2x16x8xf32>, vector<2x8x16xf32> -> vector<2x8x16xf32>
    "tpu.trace_stop"() : () -> ()
    %107 = arith.addf %106, %19 : vector<2x8x16xf32>
    %cst_36 = arith.constant -1.000000e+30 : f32
    %108 = vector.broadcast %cst_36 : f32 to vector<2x8x16xf32>
    %109 = arith.select %22, %107, %108 : vector<2x8x16xi1>, vector<2x8x16xf32>
    %cst_37 = arith.constant dense<0xFF800000> : vector<2x8xf32>
    %110 = vector.multi_reduction <maximumf>, %109, %cst_37 [2] : vector<2x8x16xf32> to vector<2x8xf32>
    %111 = vector.shape_cast %110 : vector<2x8xf32> to vector<2x8x1xf32>
    %cst_38 = arith.constant -1.000000e+30 : f32
    %112 = vector.broadcast %cst_38 : f32 to vector<2x8x16xf32>
    %113 = arith.select %22, %112, %107 : vector<2x8x16xi1>, vector<2x8x16xf32>
    %cst_39 = arith.constant dense<0xFF800000> : vector<2x8xf32>
    %114 = vector.multi_reduction <maximumf>, %113, %cst_39 [2] : vector<2x8x16xf32> to vector<2x8xf32>
    %115 = vector.shape_cast %114 : vector<2x8xf32> to vector<2x8x1xf32>
    %116 = vector.shape_cast %111 : vector<2x8x1xf32> to vector<2x8x1xf32>
    %117 = vector.broadcast %116 : vector<2x8x1xf32> to vector<2x8x16xf32>
    %118 = vector.shape_cast %115 : vector<2x8x1xf32> to vector<2x8x1xf32>
    %119 = vector.broadcast %118 : vector<2x8x1xf32> to vector<2x8x16xf32>
    %120 = arith.select %22, %117, %119 : vector<2x8x16xi1>, vector<2x8x16xf32>
    %121 = arith.subf %107, %120 : vector<2x8x16xf32>
    %122 = math.exp %121 : vector<2x8x16xf32>
    %cst_40 = arith.constant 0.000000e+00 : f32
    %123 = vector.broadcast %cst_40 : f32 to vector<2x8x16xf32>
    %124 = arith.select %22, %122, %123 : vector<2x8x16xi1>, vector<2x8x16xf32>
    %cst_41 = arith.constant dense<0.000000e+00> : vector<2x8xf32>
    %125 = vector.multi_reduction <add>, %124, %cst_41 [2] : vector<2x8x16xf32> to vector<2x8xf32>
    %126 = vector.shape_cast %125 : vector<2x8xf32> to vector<2x8x1xf32>
    %cst_42 = arith.constant 0.000000e+00 : f32
    %127 = vector.broadcast %cst_42 : f32 to vector<2x8x16xf32>
    %128 = arith.select %22, %127, %122 : vector<2x8x16xi1>, vector<2x8x16xf32>
    %cst_43 = arith.constant dense<0.000000e+00> : vector<2x8xf32>
    %129 = vector.multi_reduction <add>, %128, %cst_43 [2] : vector<2x8x16xf32> to vector<2x8xf32>
    %130 = vector.shape_cast %129 : vector<2x8xf32> to vector<2x8x1xf32>
    %c2 = arith.constant 2 : index
    %131 = memref.load %arg5[%c2] : memref<4xf32, #tpu.memory_space<smem>>
    %132 = tpu.reciprocal %130 {approx = true} : vector<2x8x1xf32> -> vector<2x8x1xf32>
    %133 = vector.broadcast %131 : f32 to vector<2x8x1xf32>
    %134 = arith.mulf %133, %132 : vector<2x8x1xf32>
    %135 = tpu.reciprocal %126 {approx = true} : vector<2x8x1xf32> -> vector<2x8x1xf32>
    %136 = vector.shape_cast %135 : vector<2x8x1xf32> to vector<2x8x1xf32>
    %137 = vector.broadcast %136 : vector<2x8x1xf32> to vector<2x8x16xf32>
    %138 = vector.shape_cast %134 : vector<2x8x1xf32> to vector<2x8x1xf32>
    %139 = vector.broadcast %138 : vector<2x8x1xf32> to vector<2x8x16xf32>
    %140 = arith.select %22, %137, %139 : vector<2x8x16xi1>, vector<2x8x16xf32>
    %141 = arith.mulf %122, %140 : vector<2x8x16xf32>
    "tpu.trace_start"() <{level = 10 : i32, message = "bqk,bkd->bqd"}> : () -> ()
    %cst_44 = arith.constant dense<0.000000e+00> : vector<2x8x8xf32>
    %142 = tpu.matmul %141, %105, %cst_44 {dimension_numbers = #tpu.dot_dimension_numbers<[2], [1], [1], [2], [0, 0, 0, 1, 1, 2], [0], [0]>} : vector<2x8x16xf32>, vector<2x16x8xf32>, vector<2x8x8xf32> -> vector<2x8x8xf32>
    "tpu.trace_stop"() : () -> ()
    %143 = vector.extract_strided_slice %16 {offsets = [0, 0, 88], sizes = [2, 8, 8], strides = [1, 1, 1]} : vector<2x16x96xf32> to vector<2x8x8xf32>
    %144 = vector.extract_strided_slice %16 {offsets = [0, 0, 24], sizes = [2, 16, 8], strides = [1, 1, 1]} : vector<2x16x96xf32> to vector<2x16x8xf32>
    %145 = vector.extract_strided_slice %16 {offsets = [0, 0, 56], sizes = [2, 16, 8], strides = [1, 1, 1]} : vector<2x16x96xf32> to vector<2x16x8xf32>
    "tpu.trace_start"() <{level = 10 : i32, message = "bqd,bkd->bqk"}> : () -> ()
    %cst_45 = arith.constant dense<0.000000e+00> : vector<2x8x16xf32>
    %146 = tpu.matmul %143, %144, %cst_45 {dimension_numbers = #tpu.dot_dimension_numbers<[2], [2], [1], [1], [0, 0, 0, 1, 1, 1], [0], [0]>} : vector<2x8x8xf32>, vector<2x16x8xf32>, vector<2x8x16xf32> -> vector<2x8x16xf32>
    "tpu.trace_stop"() : () -> ()
    %147 = arith.addf %146, %19 : vector<2x8x16xf32>
    %cst_46 = arith.constant -1.000000e+30 : f32
    %148 = vector.broadcast %cst_46 : f32 to vector<2x8x16xf32>
    %149 = arith.select %22, %147, %148 : vector<2x8x16xi1>, vector<2x8x16xf32>
    %cst_47 = arith.constant dense<0xFF800000> : vector<2x8xf32>
    %150 = vector.multi_reduction <maximumf>, %149, %cst_47 [2] : vector<2x8x16xf32> to vector<2x8xf32>
    %151 = vector.shape_cast %150 : vector<2x8xf32> to vector<2x8x1xf32>
    %cst_48 = arith.constant -1.000000e+30 : f32
    %152 = vector.broadcast %cst_48 : f32 to vector<2x8x16xf32>
    %153 = arith.select %22, %152, %147 : vector<2x8x16xi1>, vector<2x8x16xf32>
    %cst_49 = arith.constant dense<0xFF800000> : vector<2x8xf32>
    %154 = vector.multi_reduction <maximumf>, %153, %cst_49 [2] : vector<2x8x16xf32> to vector<2x8xf32>
    %155 = vector.shape_cast %154 : vector<2x8xf32> to vector<2x8x1xf32>
    %156 = vector.shape_cast %151 : vector<2x8x1xf32> to vector<2x8x1xf32>
    %157 = vector.broadcast %156 : vector<2x8x1xf32> to vector<2x8x16xf32>
    %158 = vector.shape_cast %155 : vector<2x8x1xf32> to vector<2x8x1xf32>
    %159 = vector.broadcast %158 : vector<2x8x1xf32> to vector<2x8x16xf32>
    %160 = arith.select %22, %157, %159 : vector<2x8x16xi1>, vector<2x8x16xf32>
    %161 = arith.subf %147, %160 : vector<2x8x16xf32>
    %162 = math.exp %161 : vector<2x8x16xf32>
    %cst_50 = arith.constant 0.000000e+00 : f32
    %163 = vector.broadcast %cst_50 : f32 to vector<2x8x16xf32>
    %164 = arith.select %22, %162, %163 : vector<2x8x16xi1>, vector<2x8x16xf32>
    %cst_51 = arith.constant dense<0.000000e+00> : vector<2x8xf32>
    %165 = vector.multi_reduction <add>, %164, %cst_51 [2] : vector<2x8x16xf32> to vector<2x8xf32>
    %166 = vector.shape_cast %165 : vector<2x8xf32> to vector<2x8x1xf32>
    %cst_52 = arith.constant 0.000000e+00 : f32
    %167 = vector.broadcast %cst_52 : f32 to vector<2x8x16xf32>
    %168 = arith.select %22, %167, %162 : vector<2x8x16xi1>, vector<2x8x16xf32>
    %cst_53 = arith.constant dense<0.000000e+00> : vector<2x8xf32>
    %169 = vector.multi_reduction <add>, %168, %cst_53 [2] : vector<2x8x16xf32> to vector<2x8xf32>
    %170 = vector.shape_cast %169 : vector<2x8xf32> to vector<2x8x1xf32>
    %c3 = arith.constant 3 : index
    %171 = memref.load %arg5[%c3] : memref<4xf32, #tpu.memory_space<smem>>
    %172 = tpu.reciprocal %170 {approx = true} : vector<2x8x1xf32> -> vector<2x8x1xf32>
    %173 = vector.broadcast %171 : f32 to vector<2x8x1xf32>
    %174 = arith.mulf %173, %172 : vector<2x8x1xf32>
    %175 = tpu.reciprocal %166 {approx = true} : vector<2x8x1xf32> -> vector<2x8x1xf32>
    %176 = vector.shape_cast %175 : vector<2x8x1xf32> to vector<2x8x1xf32>
    %177 = vector.broadcast %176 : vector<2x8x1xf32> to vector<2x8x16xf32>
    %178 = vector.shape_cast %174 : vector<2x8x1xf32> to vector<2x8x1xf32>
    %179 = vector.broadcast %178 : vector<2x8x1xf32> to vector<2x8x16xf32>
    %180 = arith.select %22, %177, %179 : vector<2x8x16xi1>, vector<2x8x16xf32>
    %181 = arith.mulf %162, %180 : vector<2x8x16xf32>
    "tpu.trace_start"() <{level = 10 : i32, message = "bqk,bkd->bqd"}> : () -> ()
    %cst_54 = arith.constant dense<0.000000e+00> : vector<2x8x8xf32>
    %182 = tpu.matmul %181, %145, %cst_54 {dimension_numbers = #tpu.dot_dimension_numbers<[2], [1], [1], [2], [0, 0, 0, 1, 1, 2], [0], [0]>} : vector<2x8x16xf32>, vector<2x16x8xf32>, vector<2x8x8xf32> -> vector<2x8x8xf32>
    "tpu.trace_stop"() : () -> ()
    %183 = tpu.concatenate %62, %102, %142, %182 in 2 : vector<2x8x8xf32>, vector<2x8x8xf32>, vector<2x8x8xf32>, vector<2x8x8xf32> -> vector<2x8x32xf32>
    %c0_55 = arith.constant 0 : index
    %c0_56 = arith.constant 0 : index
    %c0_57 = arith.constant 0 : index
    %184 = vector.load %arg6[%c0_55, %c0_56, %c0_57] : memref<2x8x32xf32, #tpu.memory_space<vmem>>, vector<2x8x32xf32>
    tpu.vector_store %arg6[%c0_55, %c0_56, %c0_57], %183 {strides = array<i32>} : memref<2x8x32xf32, #tpu.memory_space<vmem>>, vector<2x8x32xf32>,
    return
  }
  func.func @transform_0(%arg0: i32) -> (i32, i32, i32) {
    %c0_i32 = arith.constant 0 : i32
    %c0_i32_0 = arith.constant 0 : i32
    %c0_i32_1 = arith.constant 0 : i32
    %c0_i32_2 = arith.constant 0 : i32
    return %c0_i32, %c0_i32_0, %c0_i32_1 : i32, i32, i32
  }
  func.func @transform_1(%arg0: i32) -> (i32, i32, i32) {
    %c0_i32 = arith.constant 0 : i32
    %c0_i32_0 = arith.constant 0 : i32
    %c0_i32_1 = arith.constant 0 : i32
    %c0_i32_2 = arith.constant 0 : i32
    return %c0_i32, %c0_i32_0, %c0_i32_1 : i32, i32, i32
  }
  func.func @transform_2(%arg0: i32) -> (i32, i32) {
    %c0_i32 = arith.constant 0 : i32
    %c0_i32_0 = arith.constant 0 : i32
    %c0_i32_1 = arith.constant 0 : i32
    return %c0_i32, %c0_i32_0 : i32, i32
  }
  func.func @transform_3(%arg0: i32) -> (i32, i32, i32) {
    %c0_i32 = arith.constant 0 : i32
    %c0_i32_0 = arith.constant 0 : i32
    %c0_i32_1 = arith.constant 0 : i32
    %c0_i32_2 = arith.constant 0 : i32
    return %c0_i32, %c0_i32_0, %c0_i32_1 : i32, i32, i32
  }
  func.func @transform_4(%arg0: i32) -> i32 {
    %c0_i32 = arith.constant 0 : i32
    %c0_i32_0 = arith.constant 0 : i32
    return %c0_i32 : i32
  }
  func.func @transform_5(%arg0: i32) -> (i32, i32, i32) {
    %c0_i32 = arith.constant 0 : i32
    %c0_i32_0 = arith.constant 0 : i32
    %c0_i32_1 = arith.constant 0 : i32
    %c0_i32_2 = arith.constant 0 : i32
    return %c0_i32, %c0_i32_0, %c0_i32_1 : i32, i32, i32
  }
}

</mosaic_0001>

<llo_original>
// kernel: tpu_custom_call.1
$region0: #{tpu_custom_call.1}
  #allocation0 [shape = 'u32[]', space=smem, size = 0x4, offset = 0x4, fixed_abs, tag = 'smem constant byte address 0x4 - core index']
  #allocation1 [shape = 'u32[72,128]{1,0:T(1,128)}', space=vmem, size = 0x9000, scoped, tag = 'internal scratch']
  %s0 = inlined_call_operand.hbm [shape: f32[2,8,32], index: 0, kind: input, shape index: {}]
  %s1 = inlined_call_operand.hbm [shape: f32[2,8,32], index: 1, kind: input, shape index: {}]
  %s2 = inlined_call_operand.hbm [shape: f32[80,96], index: 2, kind: input, shape index: {}]
  %s3 = inlined_call_operand.vmem [shape: f32[2,1,16], index: 3, kind: input, shape index: {}]
  %s4 = inlined_call_operand.vmem [shape: f32[4], index: 4, kind: input, shape index: {}]
  %s5 = inlined_call_operand.hbm [shape: f32[2,8,32], index: 5, kind: output, shape index: {}]
  %s6 = sld [smem:[#allocation0]]
  $region46: #{tpu_custom_call.1} parent=0
    _
  %s8 = ssub.s32 1, %s6
  %s9 = scalar_select 0, %s8, %s6
  $region1: #{tpu_custom_call.1} parent=0
    #allocation2 [shape = 'u8[8192]{0}', space=vmem, size = 0x2000, scoped, tag = 'input window, operand 0, single buffered']
    #allocation3 [shape = 's32[1]{0}', space=sflag, size = 0x4, scoped, tag = 'scoped memory for tpu_custom_call.1']
    #allocation4 [shape = 's32[1]{0}', space=sflag, size = 0x4, scoped, tag = 'scoped memory for tpu_custom_call.1']
    #allocation5 [shape = 's32[1]{0}', space=sflag, size = 0x4, scoped, tag = 'scoped memory for tpu_custom_call.1']
    #allocation6 [shape = 'u8[8192]{0}', space=vmem, size = 0x2000, scoped, tag = 'input window, operand 1, single buffered']
    #allocation7 [shape = 's32[1]{0}', space=sflag, size = 0x4, scoped, tag = 'scoped memory for tpu_custom_call.1']
    #allocation8 [shape = 'u8[40960]{0}', space=vmem, size = 0xa000, scoped, tag = 'input window, operand 2, single buffered']
    #allocation9 [shape = 'u8[512]{0}', space=smem, size = 0x200, scoped, tag = 'input window, operand 4, single buffered']
    #allocation10 [shape = 'u8[8192]{0}', space=vmem, size = 0x2000, scoped, tag = 'output window, operand 0, single buffered']
    %10 = vsyncpa [#allocation3], 0
    %11 = vsyncpa [#allocation7], 0
    %12 = vsyncpa [#allocation5], 0
    %13 = vsyncpa [#allocation4], 0
    // Predicated region
    $region2: #{tpu_custom_call.1} parent=1 // pred_check
      _
    $region3: #{tpu_custom_call.1} parent=1 // pred_check_branch
      %15 = sbr.rel (0) target = $region5
    $region4: #{tpu_custom_call.1} parent=1 // pred_region
      %17 = vsyncadd [#allocation3], 0
      %s18 = sshll.u32 %s0, 4
      %s19 = int_to_ptr.hbm [resolvable:$true] %s18
      %s20 = sshll.u32 [#allocation2], 4
      %s21 = int_to_ptr.vmem [resolvable:$true] %s20
      %26 = dma.hbm_to_vmem [thread:$0]  %s19, 256, %s21, [#allocation3], 128, 128, 8
    $region5: #{tpu_custom_call.1} parent=1 // pred_fallthru
      _
    // Predicated region
    $region6: #{tpu_custom_call.1} parent=1 // pred_check
      _
    $region7: #{tpu_custom_call.1} parent=1 // pred_check_branch
      %28 = sbr.rel (0) target = $region9
    $region8: #{tpu_custom_call.1} parent=1 // pred_region
      %30 = vsyncadd [#allocation7], 0
      %s31 = sshll.u32 %s1, 4
      %s32 = int_to_ptr.hbm [resolvable:$true] %s31
      %s33 = sshll.u32 [#allocation6], 4
      %s34 = int_to_ptr.vmem [resolvable:$true] %s33
      %39 = dma.hbm_to_vmem [thread:$0]  %s32, 256, %s34, [#allocation7], 128, 128, 8
    $region9: #{tpu_custom_call.1} parent=1 // pred_fallthru
      _
    // Predicated region
    $region10: #{tpu_custom_call.1} parent=1 // pred_check
      _
    $region11: #{tpu_custom_call.1} parent=1 // pred_check_branch
      %41 = sbr.rel (0) target = $region13
    $region12: #{tpu_custom_call.1} parent=1 // pred_region
      %43 = vsyncadd [#allocation7], 0
      %s44 = sshll.u32 %s2, 4
      %s45 = int_to_ptr.hbm [resolvable:$true] %s44
      %s46 = sshll.u32 [#allocation8], 4
      %s47 = int_to_ptr.vmem [resolvable:$true] %s46
      %52 = dma.hbm_to_vmem [thread:$0]  %s45, 1280, %s47, [#allocation7], 128, 128, 8
    $region13: #{tpu_custom_call.1} parent=1 // pred_fallthru
      _
    // Predicated region
    $region14: #{tpu_custom_call.1} parent=1 // pred_check
      _
    $region15: #{tpu_custom_call.1} parent=1 // pred_check_branch
      %54 = sbr.rel (0) target = $region17
    $region16: #{tpu_custom_call.1} parent=1 // pred_region
      _
    $region17: #{tpu_custom_call.1} parent=1 // pred_fallthru
      _
    // Predicated region
    $region18: #{tpu_custom_call.1} parent=1 // pred_check
      _
    $region19: #{tpu_custom_call.1} parent=1 // pred_check_branch
      %56 = sbr.rel (0) target = $region21
    $region20: #{tpu_custom_call.1} parent=1 // pred_region
      %58 = vsyncadd [#allocation5], 0
      %s60 = sshll.u32 %s4, 4
      %s61 = int_to_ptr.vmem [resolvable:$true] %s60
      %63 = dma.vmem_to_smem %s61, 16, [#allocation9], [#allocation5]
    $region21: #{tpu_custom_call.1} parent=1 // pred_fallthru
      _
    // Predicated region
    $region22: #{tpu_custom_call.1} parent=1 // pred_check
      _
    $region23: #{tpu_custom_call.1} parent=1 // pred_check_branch
      %65 = sbr.rel (0) target = $region25
    $region24: #{tpu_custom_call.1} parent=1 // pred_region
      %67 = dma.done [#allocation3], 256
    $region25: #{tpu_custom_call.1} parent=1 // pred_fallthru
      _
    // Predicated region
    $region26: #{tpu_custom_call.1} parent=1 // pred_check
      _
    $region27: #{tpu_custom_call.1} parent=1 // pred_check_branch
      %69 = sbr.rel (0) target = $region29
    $region28: #{tpu_custom_call.1} parent=1 // pred_region
      %71 = dma.done [#allocation7], 256
    $region29: #{tpu_custom_call.1} parent=1 // pred_fallthru
      _
    // Predicated region
    $region30: #{tpu_custom_call.1} parent=1 // pred_check
      _
    $region31: #{tpu_custom_call.1} parent=1 // pred_check_branch
      %73 = sbr.rel (0) target = $region33
    $region32: #{tpu_custom_call.1} parent=1 // pred_region
      %75 = dma.done [#allocation7], 1280
    $region33: #{tpu_custom_call.1} parent=1 // pred_fallthru
      _
    // Predicated region
    $region34: #{tpu_custom_call.1} parent=1 // pred_check
      _
    $region35: #{tpu_custom_call.1} parent=1 // pred_check_branch
      %77 = sbr.rel (0) target = $region37
    $region36: #{tpu_custom_call.1} parent=1 // pred_region
      %79 = dma.done [#allocation5], 16
    $region37: #{tpu_custom_call.1} parent=1 // pred_fallthru
      _
    %80 = sfence
    %v81 = vld [vmem:[#allocation2] sm:$0xff]
    %v82 = vld [vmem:[#allocation2 + $0x8] sm:$0xff]
    %v83 = vld [vmem:[#allocation6] sm:$0xff]
    %v84 = vld [vmem:[#allocation6 + $0x8] sm:$0xff]
    %v85 = vld [vmem:[#allocation8] sm:$0xff]
    %v86 = vld [vmem:[#allocation8 + $0x8] sm:$0xff]
    %v87 = vld [vmem:[#allocation8 + $0x10] sm:$0xff]
    %v88 = vld [vmem:[#allocation8 + $0x18] sm:$0xff]
    %v89 = vld [vmem:[#allocation8 + $0x40] sm:$0x1]
    %v90 = vperm.slane %v89, 0
    %vm91 = vcmask 261120
    %v93 = vsel %vm91, %v81, 0
    %v96 = vsel %vm91, %v82, 0
    %98 = vmatpush.msra.mxu0 0.0
    %99 = vmatpush.msra.mxu0 0.0
    %100 = vmatpush.msra.mxu0 0.0
    %101 = vmatpush.msra.mxu0 0.0
    %102 = vmatpush.msra.mxu0 0.0
    %103 = vmatpush.msra.mxu0 0.0
    %104 = vmatpush.msra.mxu0 0.0
    %105 = vmatpush.msra.mxu0 0.0
    %106 = vmatpush.msra.mxu0 0.0
    %107 = vmatpush.msra.mxu0 0.0
    %108 = vmatpush.msra.mxu0 0.0
    %109 = vmatpush.msra.mxu0 0.0
    %110 = vmatpush.msra.mxu0 %v88
    %111 = vmatpush.msra.mxu0 %v87
    %112 = vmatpush.msra.mxu0 %v86
    %113 = vmatpush.msra.mxu0 %v85
    %114 = vmatmul.f32.gmra.mxu0 %v93
    %v115 = vpop.f32.mrf.mxu0
    %v116 = vadd.f32 %v90, %v115
    %117 = vmatmul.f32.gmra.mxu0 %v96
    %v118 = vpop.f32.mrf.mxu0
    %v119 = vadd.f32 %v90, %v118
    %120 = vdwg.mxu0
    %v121 = vld [vmem:[#allocation8 + $0x20] sm:$0xff]
    %v122 = vld [vmem:[#allocation8 + $0x28] sm:$0xff]
    %v123 = vld [vmem:[#allocation8 + $0x30] sm:$0xff]
    %v124 = vld [vmem:[#allocation8 + $0x38] sm:$0xff]
    %v125 = vld [vmem:[#allocation8 + $0x48] sm:$0x1]
    %v126 = vperm.slane %v125, 0
    %v128 = vsel %vm91, %v83, 0
    %v131 = vsel %vm91, %v84, 0
    %133 = vmatpush.msra.mxu0 0.0
    %134 = vmatpush.msra.mxu0 0.0
    %135 = vmatpush.msra.mxu0 0.0
    %136 = vmatpush.msra.mxu0 0.0
    %137 = vmatpush.msra.mxu0 0.0
    %138 = vmatpush.msra.mxu0 0.0
    %139 = vmatpush.msra.mxu0 0.0
    %140 = vmatpush.msra.mxu0 0.0
    %141 = vmatpush.msra.mxu0 0.0
    %142 = vmatpush.msra.mxu0 0.0
    %143 = vmatpush.msra.mxu0 0.0
    %144 = vmatpush.msra.mxu0 0.0
    %145 = vmatpush.msra.mxu0 %v124
    %146 = vmatpush.msra.mxu0 %v123
    %147 = vmatpush.msra.mxu0 %v122
    %148 = vmatpush.msra.mxu0 %v121
    %149 = vmatmul.f32.gmra.mxu0 %v128
    %v150 = vpop.f32.mrf.mxu0
    %v151 = vadd.f32 %v126, %v150
    %152 = vmatmul.f32.gmra.mxu0 %v131
    %v153 = vpop.f32.mrf.mxu0
    %v154 = vadd.f32 %v126, %v153
    %155 = vdwg.mxu0
    %v156 = vld [vmem:[%s3] sm:$0x1]
    %v157 = vld [vmem:[%s3 + $0x1] sm:$0x1]
    %v160 = vperm.slane %v156, 0
    %v161 = vperm.slane %v157, 0
    %v164 = vlaneseq
    %v165 = vand.u32 %v164, 127
    %vm166 = vcmp.lt.s32.totalorder %v165, 8
    %168 = vrot.lane.b32.xlu0 %v116, 64
    %v169 = vpop.permute.xlu0 %168
    %vm170 = vcmask 64512
    %v171 = vsel %vm170, %v169, 0
    %v173 = vsel %vm170, %v116, 0
    %v176 = vsel %vm170, %v151, 0
    %178 = vmatpush.xpose.msra.mxu0 0.0
    %179 = vmatpush.xpose.msra.mxu0 0.0
    %180 = vmatpush.xpose.msra.mxu0 0.0
    %181 = vmatpush.xpose.msra.mxu0 0.0
    %182 = vmatpush.xpose.msra.mxu0 0.0
    %183 = vmatpush.xpose.msra.mxu0 0.0
    %184 = vmatpush.xpose.msra.mxu0 0.0
    %185 = vmatpush.xpose.msra.mxu0 0.0
    %186 = vmatpush.xpose.msra.mxu0 0.0
    %187 = vmatpush.xpose.msra.mxu0 0.0
    %188 = vmatpush.xpose.msra.mxu0 0.0
    %189 = vmatpush.xpose.msra.mxu0 0.0
    %190 = vmatpush.xpose.msra.mxu0 0.0
    %191 = vmatpush.xpose.msra.mxu0 0.0
    %192 = vmatpush.xpose.msra.mxu0 %v176
    %193 = vmatpush.xpose.msra.mxu0 %v173
    %194 = vmatmul.f32.gmra.mxu0 %v171
    %v195 = vpop.f32.mrf.mxu0
    %v196 = vadd.f32 %v160, %v195
    %197 = vdwg.mxu0
    %199 = vrot.lane.b32.xlu0 %v119, 64
    %v200 = vpop.permute.xlu0 %199
    %v201 = vsel %vm170, %v200, 0
    %v203 = vsel %vm170, %v119, 0
    %v206 = vsel %vm170, %v154, 0
    %208 = vmatpush.xpose.msra.mxu0 0.0
    %209 = vmatpush.xpose.msra.mxu0 0.0
    %210 = vmatpush.xpose.msra.mxu0 0.0
    %211 = vmatpush.xpose.msra.mxu0 0.0
    %212 = vmatpush.xpose.msra.mxu0 0.0
    %213 = vmatpush.xpose.msra.mxu0 0.0
    %214 = vmatpush.xpose.msra.mxu0 0.0
    %215 = vmatpush.xpose.msra.mxu0 0.0
    %216 = vmatpush.xpose.msra.mxu0 0.0
    %217 = vmatpush.xpose.msra.mxu0 0.0
    %218 = vmatpush.xpose.msra.mxu0 0.0
    %219 = vmatpush.xpose.msra.mxu0 0.0
    %220 = vmatpush.xpose.msra.mxu0 0.0
    %221 = vmatpush.xpose.msra.mxu0 0.0
    %222 = vmatpush.xpose.msra.mxu0 %v206
    %223 = vmatpush.xpose.msra.mxu0 %v203
    %224 = vmatmul.f32.gmra.mxu0 %v201
    %v225 = vpop.f32.mrf.mxu0
    %v226 = vadd.f32 %v161, %v225
    %227 = vdwg.mxu0
    %v228 = vsel %vm166, %v196, -1e+30
    %v229 = vsel %vm166, %v226, -1e+30
    %vm230 = vcmask 130048
    %v231 = vsel %vm230, %v228, -inf
    %232 = vmax.xlane.f32.xlu0 %v231
    %v233 = vpop.xlane.xlu0 %232
    %v234 = vsel %vm230, %v229, -inf
    %235 = vmax.xlane.f32.xlu0 %v234
    %v236 = vpop.xlane.xlu0 %235
    %v237 = vsel %vm166, -1e+30, %v196
    %v238 = vsel %vm166, -1e+30, %v226
    %v239 = vsel %vm230, %v237, -inf
    %240 = vmax.xlane.f32.xlu0 %v239
    %v241 = vpop.xlane.xlu0 %240
    %v242 = vsel %vm230, %v238, -inf
    %243 = vmax.xlane.f32.xlu0 %v242
    %v244 = vpop.xlane.xlu0 %243
    %v245 = vsel %vm166, %v233, %v241
    %v246 = vsel %vm166, %v236, %v244
    %v247 = vsub.f32 %v196, %v245
    %v248 = vsub.f32 %v226, %v246
    %v249 = vmul.f32 %v247, 1.442695
    %v250 = vpow.pop %v249
    %v251 = vmul.f32 %v248, 1.442695
    %v252 = vpow.pop %v251
    %v253 = vsel %vm166, %v250, 0.0
    %v254 = vsel %vm166, %v252, 0.0
    %v255 = vsel %vm230, %v253, 0.0
    %256 = vadd.xlane.f32.xlu0 %v255
    %v257 = vpop.xlane.xlu0 %256
    %v258 = vsel %vm230, %v254, 0.0
    %259 = vadd.xlane.f32.xlu0 %v258
    %v260 = vpop.xlane.xlu0 %259
    %v261 = vsel %vm166, 0.0, %v250
    %v262 = vsel %vm166, 0.0, %v252
    %v263 = vsel %vm230, %v261, 0.0
    %264 = vadd.xlane.f32.xlu0 %v263
    %v265 = vpop.xlane.xlu0 %264
    %v266 = vsel %vm230, %v262, 0.0
    %267 = vadd.xlane.f32.xlu0 %v266
    %v268 = vpop.xlane.xlu0 %267
    %s269 = sld [smem:[#allocation9]]
    %v270 = vrcp.pop %v265
    %v271 = vrcp.pop %v268
    %v272 = vstv %s269
    %v273 = vmul.f32 %v272, %v270
    %v274 = vmul.f32 %v272, %v271
    %v275 = vrcp.pop %v257
    %v276 = vrcp.pop %v260
    %v277 = vsel %vm166, %v275, %v273
    %v278 = vsel %vm166, %v276, %v274
    %v279 = vmul.f32 %v250, %v277
    %v280 = vmul.f32 %v252, %v278
    %281 = vrot.lane.b32.xlu0 %v116, 96
    %v282 = vpop.permute.xlu0 %281
    %283 = vrot.lane.b32.xlu0 %v151, 96
    %v284 = vpop.permute.xlu0 %283
    %v288 = vsel %vm230, %v279, 0
    %290 = vmatpush.msra.mxu0 0.0
    %291 = vmatpush.msra.mxu0 0.0
    %292 = vmatpush.msra.mxu0 0.0
    %293 = vmatpush.msra.mxu0 0.0
    %294 = vmatpush.msra.mxu0 0.0
    %295 = vmatpush.msra.mxu0 0.0
    %296 = vmatpush.msra.mxu0 0.0
    %297 = vmatpush.msra.mxu0 0.0
    %298 = vmatpush.msra.mxu0 0.0
    %299 = vmatpush.msra.mxu0 0.0
    %300 = vmatpush.msra.mxu0 0.0
    %301 = vmatpush.msra.mxu0 0.0
    %302 = vmatpush.msra.mxu0 0.0
    %303 = vmatpush.msra.mxu0 0.0
    %304 = vmatpush.msra.mxu0 %v284
    %305 = vmatpush.msra.mxu0 %v282
    %306 = vmatmul.f32.gmra.mxu0 %v288
    %v307 = vpop.f32.mrf.mxu0
    %v308 = vadd.f32 0.0, %v307
    %309 = vdwg.mxu0
    %310 = vrot.lane.b32.xlu0 %v119, 96
    %v311 = vpop.permute.xlu0 %310
    %312 = vrot.lane.b32.xlu0 %v154, 96
    %v313 = vpop.permute.xlu0 %312
    %v317 = vsel %vm230, %v280, 0
    %319 = vmatpush.msra.mxu0 0.0
    %320 = vmatpush.msra.mxu0 0.0
    %321 = vmatpush.msra.mxu0 0.0
    %322 = vmatpush.msra.mxu0 0.0
    %323 = vmatpush.msra.mxu0 0.0
    %324 = vmatpush.msra.mxu0 0.0
    %325 = vmatpush.msra.mxu0 0.0
    %326 = vmatpush.msra.mxu0 0.0
    %327 = vmatpush.msra.mxu0 0.0
    %328 = vmatpush.msra.mxu0 0.0
    %329 = vmatpush.msra.mxu0 0.0
    %330 = vmatpush.msra.mxu0 0.0
    %331 = vmatpush.msra.mxu0 0.0
    %332 = vmatpush.msra.mxu0 0.0
    %333 = vmatpush.msra.mxu0 %v313
    %334 = vmatpush.msra.mxu0 %v311
    %335 = vmatmul.f32.gmra.mxu0 %v317
    %v336 = vpop.f32.mrf.mxu0
    %v337 = vadd.f32 0.0, %v336
    %338 = vdwg.mxu0
    %339 = vrot.lane.b32.xlu0 %v116, 56
    %v340 = vpop.permute.xlu0 %339
    %341 = vrot.lane.b32.xlu0 %v116, 120
    %v342 = vpop.permute.xlu0 %341
    %343 = vrot.lane.b32.xlu0 %v151, 120
    %v344 = vpop.permute.xlu0 %343
    %v345 = vsel %vm170, %v340, 0
    %v347 = vsel %vm170, %v342, 0
    %v349 = vsel %vm170, %v344, 0
    %351 = vmatpush.xpose.msra.mxu0 0.0
    %352 = vmatpush.xpose.msra.mxu0 0.0
    %353 = vmatpush.xpose.msra.mxu0 0.0
    %354 = vmatpush.xpose.msra.mxu0 0.0
    %355 = vmatpush.xpose.msra.mxu0 0.0
    %356 = vmatpush.xpose.msra.mxu0 0.0
    %357 = vmatpush.xpose.msra.mxu0 0.0
    %358 = vmatpush.xpose.msra.mxu0 0.0
    %359 = vmatpush.xpose.msra.mxu0 0.0
    %360 = vmatpush.xpose.msra.mxu0 0.0
    %361 = vmatpush.xpose.msra.mxu0 0.0
    %362 = vmatpush.xpose.msra.mxu0 0.0
    %363 = vmatpush.xpose.msra.mxu0 0.0
    %364 = vmatpush.xpose.msra.mxu0 0.0
    %365 = vmatpush.xpose.msra.mxu0 %v349
    %366 = vmatpush.xpose.msra.mxu0 %v347
    %367 = vmatmul.f32.gmra.mxu0 %v345
    %v368 = vpop.f32.mrf.mxu0
    %v369 = vadd.f32 %v160, %v368
    %370 = vdwg.mxu0
    %371 = vrot.lane.b32.xlu0 %v119, 56
    %v372 = vpop.permute.xlu0 %371
    %373 = vrot.lane.b32.xlu0 %v119, 120
    %v374 = vpop.permute.xlu0 %373
    %375 = vrot.lane.b32.xlu0 %v154, 120
    %v376 = vpop.permute.xlu0 %375
    %v377 = vsel %vm170, %v372, 0
    %v379 = vsel %vm170, %v374, 0
    %v381 = vsel %vm170, %v376, 0
    %383 = vmatpush.xpose.msra.mxu0 0.0
    %384 = vmatpush.xpose.msra.mxu0 0.0
    %385 = vmatpush.xpose.msra.mxu0 0.0
    %386 = vmatpush.xpose.msra.mxu0 0.0
    %387 = vmatpush.xpose.msra.mxu0 0.0
    %388 = vmatpush.xpose.msra.mxu0 0.0
    %389 = vmatpush.xpose.msra.mxu0 0.0
    %390 = vmatpush.xpose.msra.mxu0 0.0
    %391 = vmatpush.xpose.msra.mxu0 0.0
    %392 = vmatpush.xpose.msra.mxu0 0.0
    %393 = vmatpush.xpose.msra.mxu0 0.0
    %394 = vmatpush.xpose.msra.mxu0 0.0
    %395 = vmatpush.xpose.msra.mxu0 0.0
    %396 = vmatpush.xpose.msra.mxu0 0.0
    %397 = vmatpush.xpose.msra.mxu0 %v381
    %398 = vmatpush.xpose.msra.mxu0 %v379
    %399 = vmatmul.f32.gmra.mxu0 %v377
    %v400 = vpop.f32.mrf.mxu0
    %v401 = vadd.f32 %v161, %v400
    %402 = vdwg.mxu0
    %v403 = vsel %vm166, %v369, -1e+30
    %v404 = vsel %vm166, %v401, -1e+30
    %v405 = vsel %vm230, %v403, -inf
    %406 = vmax.xlane.f32.xlu0 %v405
    %v407 = vpop.xlane.xlu0 %406
    %v408 = vsel %vm230, %v404, -inf
    %409 = vmax.xlane.f32.xlu0 %v408
    %v410 = vpop.xlane.xlu0 %409
    %v411 = vsel %vm166, -1e+30, %v369
    %v412 = vsel %vm166, -1e+30, %v401
    %v413 = vsel %vm230, %v411, -inf
    %414 = vmax.xlane.f32.xlu0 %v413
    %v415 = vpop.xlane.xlu0 %414
    %v416 = vsel %vm230, %v412, -inf
    %417 = vmax.xlane.f32.xlu0 %v416
    %v418 = vpop.xlane.xlu0 %417
    %v419 = vsel %vm166, %v407, %v415
    %v420 = vsel %vm166, %v410, %v418
    %v421 = vsub.f32 %v369, %v419
    %v422 = vsub.f32 %v401, %v420
    %v423 = vmul.f32 %v421, 1.442695
    %v424 = vpow.pop %v423
    %v425 = vmul.f32 %v422, 1.442695
    %v426 = vpow.pop %v425
    %v427 = vsel %vm166, %v424, 0.0
    %v428 = vsel %vm166, %v426, 0.0
    %v429 = vsel %vm230, %v427, 0.0
    %430 = vadd.xlane.f32.xlu0 %v429
    %v431 = vpop.xlane.xlu0 %430
    %v432 = vsel %vm230, %v428, 0.0
    %433 = vadd.xlane.f32.xlu0 %v432
    %v434 = vpop.xlane.xlu0 %433
    %v435 = vsel %vm166, 0.0, %v424
    %v436 = vsel %vm166, 0.0, %v426
    %v437 = vsel %vm230, %v435, 0.0
    %438 = vadd.xlane.f32.xlu0 %v437
    %v439 = vpop.xlane.xlu0 %438
    %v440 = vsel %vm230, %v436, 0.0
    %441 = vadd.xlane.f32.xlu0 %v440
    %v442 = vpop.xlane.xlu0 %441
    %s443 = sld [smem:[#allocation9 + $0x1]]
    %v444 = vrcp.pop %v439
    %v445 = vrcp.pop %v442
    %v446 = vstv %s443
    %v447 = vmul.f32 %v446, %v444
    %v448 = vmul.f32 %v446, %v445
    %v449 = vrcp.pop %v431
    %v450 = vrcp.pop %v434
    %v451 = vsel %vm166, %v449, %v447
    %v452 = vsel %vm166, %v450, %v448
    %v453 = vmul.f32 %v424, %v451
    %v454 = vmul.f32 %v426, %v452
    %455 = vrot.lane.b32.xlu0 %v116, 88
    %v456 = vpop.permute.xlu0 %455
    %457 = vrot.lane.b32.xlu0 %v151, 88
    %v458 = vpop.permute.xlu0 %457
    %v462 = vsel %vm230, %v453, 0
    %464 = vmatpush.msra.mxu0 0.0
    %465 = vmatpush.msra.mxu0 0.0
    %466 = vmatpush.msra.mxu0 0.0
    %467 = vmatpush.msra.mxu0 0.0
    %468 = vmatpush.msra.mxu0 0.0
    %469 = vmatpush.msra.mxu0 0.0
    %470 = vmatpush.msra.mxu0 0.0
    %471 = vmatpush.msra.mxu0 0.0
    %472 = vmatpush.msra.mxu0 0.0
    %473 = vmatpush.msra.mxu0 0.0
    %474 = vmatpush.msra.mxu0 0.0
    %475 = vmatpush.msra.mxu0 0.0
    %476 = vmatpush.msra.mxu0 0.0
    %477 = vmatpush.msra.mxu0 0.0
    %478 = vmatpush.msra.mxu0 %v458
    %479 = vmatpush.msra.mxu0 %v456
    %480 = vmatmul.f32.gmra.mxu0 %v462
    %v481 = vpop.f32.mrf.mxu0
    %v482 = vadd.f32 0.0, %v481
    %483 = vdwg.mxu0
    %484 = vrot.lane.b32.xlu0 %v119, 88
    %v485 = vpop.permute.xlu0 %484
    %486 = vrot.lane.b32.xlu0 %v154, 88
    %v487 = vpop.permute.xlu0 %486
    %v491 = vsel %vm230, %v454, 0
    %493 = vmatpush.msra.mxu0 0.0
    %494 = vmatpush.msra.mxu0 0.0
    %495 = vmatpush.msra.mxu0 0.0
    %496 = vmatpush.msra.mxu0 0.0
    %497 = vmatpush.msra.mxu0 0.0
    %498 = vmatpush.msra.mxu0 0.0
    %499 = vmatpush.msra.mxu0 0.0
    %500 = vmatpush.msra.mxu0 0.0
    %501 = vmatpush.msra.mxu0 0.0
    %502 = vmatpush.msra.mxu0 0.0
    %503 = vmatpush.msra.mxu0 0.0
    %504 = vmatpush.msra.mxu0 0.0
    %505 = vmatpush.msra.mxu0 0.0
    %506 = vmatpush.msra.mxu0 0.0
    %507 = vmatpush.msra.mxu0 %v487
    %508 = vmatpush.msra.mxu0 %v485
    %509 = vmatmul.f32.gmra.mxu0 %v491
    %v510 = vpop.f32.mrf.mxu0
    %v511 = vadd.f32 0.0, %v510
    %512 = vdwg.mxu0
    %513 = vrot.lane.b32.xlu0 %v116, 48
    %v514 = vpop.permute.xlu0 %513
    %515 = vrot.lane.b32.xlu0 %v116, 112
    %v516 = vpop.permute.xlu0 %515
    %517 = vrot.lane.b32.xlu0 %v151, 112
    %v518 = vpop.permute.xlu0 %517
    %v519 = vsel %vm170, %v514, 0
    %v521 = vsel %vm170, %v516, 0
    %v523 = vsel %vm170, %v518, 0
    %525 = vmatpush.xpose.msra.mxu0 0.0
    %526 = vmatpush.xpose.msra.mxu0 0.0
    %527 = vmatpush.xpose.msra.mxu0 0.0
    %528 = vmatpush.xpose.msra.mxu0 0.0
    %529 = vmatpush.xpose.msra.mxu0 0.0
    %530 = vmatpush.xpose.msra.mxu0 0.0
    %531 = vmatpush.xpose.msra.mxu0 0.0
    %532 = vmatpush.xpose.msra.mxu0 0.0
    %533 = vmatpush.xpose.msra.mxu0 0.0
    %534 = vmatpush.xpose.msra.mxu0 0.0
    %535 = vmatpush.xpose.msra.mxu0 0.0
    %536 = vmatpush.xpose.msra.mxu0 0.0
    %537 = vmatpush.xpose.msra.mxu0 0.0
    %538 = vmatpush.xpose.msra.mxu0 0.0
    %539 = vmatpush.xpose.msra.mxu0 %v523
    %540 = vmatpush.xpose.msra.mxu0 %v521
    %541 = vmatmul.f32.gmra.mxu0 %v519
    %v542 = vpop.f32.mrf.mxu0
    %v543 = vadd.f32 %v160, %v542
    %544 = vdwg.mxu0
    %545 = vrot.lane.b32.xlu0 %v119, 48
    %v546 = vpop.permute.xlu0 %545
    %547 = vrot.lane.b32.xlu0 %v119, 112
    %v548 = vpop.permute.xlu0 %547
    %549 = vrot.lane.b32.xlu0 %v154, 112
    %v550 = vpop.permute.xlu0 %549
    %v551 = vsel %vm170, %v546, 0
    %v553 = vsel %vm170, %v548, 0
    %v555 = vsel %vm170, %v550, 0
    %557 = vmatpush.xpose.msra.mxu0 0.0
    %558 = vmatpush.xpose.msra.mxu0 0.0
    %559 = vmatpush.xpose.msra.mxu0 0.0
    %560 = vmatpush.xpose.msra.mxu0 0.0
    %561 = vmatpush.xpose.msra.mxu0 0.0
    %562 = vmatpush.xpose.msra.mxu0 0.0
    %563 = vmatpush.xpose.msra.mxu0 0.0
    %564 = vmatpush.xpose.msra.mxu0 0.0
    %565 = vmatpush.xpose.msra.mxu0 0.0
    %566 = vmatpush.xpose.msra.mxu0 0.0
    %567 = vmatpush.xpose.msra.mxu0 0.0
    %568 = vmatpush.xpose.msra.mxu0 0.0
    %569 = vmatpush.xpose.msra.mxu0 0.0
    %570 = vmatpush.xpose.msra.mxu0 0.0
    %571 = vmatpush.xpose.msra.mxu0 %v555
    %572 = vmatpush.xpose.msra.mxu0 %v553
    %573 = vmatmul.f32.gmra.mxu0 %v551
    %v574 = vpop.f32.mrf.mxu0
    %v575 = vadd.f32 %v161, %v574
    %576 = vdwg.mxu0
    %v577 = vsel %vm166, %v543, -1e+30
    %v578 = vsel %vm166, %v575, -1e+30
    %v579 = vsel %vm230, %v577, -inf
    %580 = vmax.xlane.f32.xlu0 %v579
    %v581 = vpop.xlane.xlu0 %580
    %v582 = vsel %vm230, %v578, -inf
    %583 = vmax.xlane.f32.xlu0 %v582
    %v584 = vpop.xlane.xlu0 %583
    %v585 = vsel %vm166, -1e+30, %v543
    %v586 = vsel %vm166, -1e+30, %v575
    %v587 = vsel %vm230, %v585, -inf
    %588 = vmax.xlane.f32.xlu0 %v587
    %v589 = vpop.xlane.xlu0 %588
    %v590 = vsel %vm230, %v586, -inf
    %591 = vmax.xlane.f32.xlu0 %v590
    %v592 = vpop.xlane.xlu0 %591
    %v593 = vsel %vm166, %v581, %v589
    %v594 = vsel %vm166, %v584, %v592
    %v595 = vsub.f32 %v543, %v593
    %v596 = vsub.f32 %v575, %v594
    %v597 = vmul.f32 %v595, 1.442695
    %v598 = vpow.pop %v597
    %v599 = vmul.f32 %v596, 1.442695
    %v600 = vpow.pop %v599
    %v601 = vsel %vm166, %v598, 0.0
    %v602 = vsel %vm166, %v600, 0.0
    %v603 = vsel %vm230, %v601, 0.0
    %604 = vadd.xlane.f32.xlu0 %v603
    %v605 = vpop.xlane.xlu0 %604
    %v606 = vsel %vm230, %v602, 0.0
    %607 = vadd.xlane.f32.xlu0 %v606
    %v608 = vpop.xlane.xlu0 %607
    %v609 = vsel %vm166, 0.0, %v598
    %v610 = vsel %vm166, 0.0, %v600
    %v611 = vsel %vm230, %v609, 0.0
    %612 = vadd.xlane.f32.xlu0 %v611
    %v613 = vpop.xlane.xlu0 %612
    %v614 = vsel %vm230, %v610, 0.0
    %615 = vadd.xlane.f32.xlu0 %v614
    %v616 = vpop.xlane.xlu0 %615
    %s617 = sld [smem:[#allocation9 + $0x2]]
    %v618 = vrcp.pop %v613
    %v619 = vrcp.pop %v616
    %v620 = vstv %s617
    %v621 = vmul.f32 %v620, %v618
    %v622 = vmul.f32 %v620, %v619
    %v623 = vrcp.pop %v605
    %v624 = vrcp.pop %v608
    %v625 = vsel %vm166, %v623, %v621
    %v626 = vsel %vm166, %v624, %v622
    %v627 = vmul.f32 %v598, %v625
    %v628 = vmul.f32 %v600, %v626
    %629 = vrot.lane.b32.xlu0 %v116, 80
    %v630 = vpop.permute.xlu0 %629
    %631 = vrot.lane.b32.xlu0 %v151, 80
    %v632 = vpop.permute.xlu0 %631
    %v636 = vsel %vm230, %v627, 0
    %638 = vmatpush.msra.mxu0 0.0
    %639 = vmatpush.msra.mxu0 0.0
    %640 = vmatpush.msra.mxu0 0.0
    %641 = vmatpush.msra.mxu0 0.0
    %642 = vmatpush.msra.mxu0 0.0
    %643 = vmatpush.msra.mxu0 0.0
    %644 = vmatpush.msra.mxu0 0.0
    %645 = vmatpush.msra.mxu0 0.0
    %646 = vmatpush.msra.mxu0 0.0
    %647 = vmatpush.msra.mxu0 0.0
    %648 = vmatpush.msra.mxu0 0.0
    %649 = vmatpush.msra.mxu0 0.0
    %650 = vmatpush.msra.mxu0 0.0
    %651 = vmatpush.msra.mxu0 0.0
    %652 = vmatpush.msra.mxu0 %v632
    %653 = vmatpush.msra.mxu0 %v630
    %654 = vmatmul.f32.gmra.mxu0 %v636
    %v655 = vpop.f32.mrf.mxu0
    %v656 = vadd.f32 0.0, %v655
    %657 = vdwg.mxu0
    %658 = vrot.lane.b32.xlu0 %v119, 80
    %v659 = vpop.permute.xlu0 %658
    %660 = vrot.lane.b32.xlu0 %v154, 80
    %v661 = vpop.permute.xlu0 %660
    %v665 = vsel %vm230, %v628, 0
    %667 = vmatpush.msra.mxu0 0.0
    %668 = vmatpush.msra.mxu0 0.0
    %669 = vmatpush.msra.mxu0 0.0
    %670 = vmatpush.msra.mxu0 0.0
    %671 = vmatpush.msra.mxu0 0.0
    %672 = vmatpush.msra.mxu0 0.0
    %673 = vmatpush.msra.mxu0 0.0
    %674 = vmatpush.msra.mxu0 0.0
    %675 = vmatpush.msra.mxu0 0.0
    %676 = vmatpush.msra.mxu0 0.0
    %677 = vmatpush.msra.mxu0 0.0
    %678 = vmatpush.msra.mxu0 0.0
    %679 = vmatpush.msra.mxu0 0.0
    %680 = vmatpush.msra.mxu0 0.0
    %681 = vmatpush.msra.mxu0 %v661
    %682 = vmatpush.msra.mxu0 %v659
    %683 = vmatmul.f32.gmra.mxu0 %v665
    %v684 = vpop.f32.mrf.mxu0
    %v685 = vadd.f32 0.0, %v684
    %686 = vdwg.mxu0
    %687 = vrot.lane.b32.xlu0 %v116, 40
    %v688 = vpop.permute.xlu0 %687
    %689 = vrot.lane.b32.xlu0 %v116, 104
    %v690 = vpop.permute.xlu0 %689
    %691 = vrot.lane.b32.xlu0 %v151, 104
    %v692 = vpop.permute.xlu0 %691
    %v693 = vsel %vm170, %v688, 0
    %v695 = vsel %vm170, %v690, 0
    %v697 = vsel %vm170, %v692, 0
    %699 = vmatpush.xpose.msra.mxu0 0.0
    %700 = vmatpush.xpose.msra.mxu0 0.0
    %701 = vmatpush.xpose.msra.mxu0 0.0
    %702 = vmatpush.xpose.msra.mxu0 0.0
    %703 = vmatpush.xpose.msra.mxu0 0.0
    %704 = vmatpush.xpose.msra.mxu0 0.0
    %705 = vmatpush.xpose.msra.mxu0 0.0
    %706 = vmatpush.xpose.msra.mxu0 0.0
    %707 = vmatpush.xpose.msra.mxu0 0.0
    %708 = vmatpush.xpose.msra.mxu0 0.0
    %709 = vmatpush.xpose.msra.mxu0 0.0
    %710 = vmatpush.xpose.msra.mxu0 0.0
    %711 = vmatpush.xpose.msra.mxu0 0.0
    %712 = vmatpush.xpose.msra.mxu0 0.0
    %713 = vmatpush.xpose.msra.mxu0 %v697
    %714 = vmatpush.xpose.msra.mxu0 %v695
    %715 = vmatmul.f32.gmra.mxu0 %v693
    %v716 = vpop.f32.mrf.mxu0
    %v717 = vadd.f32 %v160, %v716
    %718 = vdwg.mxu0
    %719 = vrot.lane.b32.xlu0 %v119, 40
    %v720 = vpop.permute.xlu0 %719
    %721 = vrot.lane.b32.xlu0 %v119, 104
    %v722 = vpop.permute.xlu0 %721
    %723 = vrot.lane.b32.xlu0 %v154, 104
    %v724 = vpop.permute.xlu0 %723
    %v725 = vsel %vm170, %v720, 0
    %v727 = vsel %vm170, %v722, 0
    %v729 = vsel %vm170, %v724, 0
    %731 = vmatpush.xpose.msra.mxu0 0.0
    %732 = vmatpush.xpose.msra.mxu0 0.0
    %733 = vmatpush.xpose.msra.mxu0 0.0
    %734 = vmatpush.xpose.msra.mxu0 0.0
    %735 = vmatpush.xpose.msra.mxu0 0.0
    %736 = vmatpush.xpose.msra.mxu0 0.0
    %737 = vmatpush.xpose.msra.mxu0 0.0
    %738 = vmatpush.xpose.msra.mxu0 0.0
    %739 = vmatpush.xpose.msra.mxu0 0.0
    %740 = vmatpush.xpose.msra.mxu0 0.0
    %741 = vmatpush.xpose.msra.mxu0 0.0
    %742 = vmatpush.xpose.msra.mxu0 0.0
    %743 = vmatpush.xpose.msra.mxu0 0.0
    %744 = vmatpush.xpose.msra.mxu0 0.0
    %745 = vmatpush.xpose.msra.mxu0 %v729
    %746 = vmatpush.xpose.msra.mxu0 %v727
    %747 = vmatmul.f32.gmra.mxu0 %v725
    %v748 = vpop.f32.mrf.mxu0
    %v749 = vadd.f32 %v161, %v748
    %750 = vdwg.mxu0
    %v751 = vsel %vm166, %v717, -1e+30
    %v752 = vsel %vm166, %v749, -1e+30
    %v753 = vsel %vm230, %v751, -inf
    %754 = vmax.xlane.f32.xlu0 %v753
    %v755 = vpop.xlane.xlu0 %754
    %v756 = vsel %vm230, %v752, -inf
    %757 = vmax.xlane.f32.xlu0 %v756
    %v758 = vpop.xlane.xlu0 %757
    %v759 = vsel %vm166, -1e+30, %v717
    %v760 = vsel %vm166, -1e+30, %v749
    %v761 = vsel %vm230, %v759, -inf
    %762 = vmax.xlane.f32.xlu0 %v761
    %v763 = vpop.xlane.xlu0 %762
    %v764 = vsel %vm230, %v760, -inf
    %765 = vmax.xlane.f32.xlu0 %v764
    %v766 = vpop.xlane.xlu0 %765
    %v767 = vsel %vm166, %v755, %v763
    %v768 = vsel %vm166, %v758, %v766
    %v769 = vsub.f32 %v717, %v767
    %v770 = vsub.f32 %v749, %v768
    %v771 = vmul.f32 %v769, 1.442695
    %v772 = vpow.pop %v771
    %v773 = vmul.f32 %v770, 1.442695
    %v774 = vpow.pop %v773
    %v775 = vsel %vm166, %v772, 0.0
    %v776 = vsel %vm166, %v774, 0.0
    %v777 = vsel %vm230, %v775, 0.0
    %778 = vadd.xlane.f32.xlu0 %v777
    %v779 = vpop.xlane.xlu0 %778
    %v780 = vsel %vm230, %v776, 0.0
    %781 = vadd.xlane.f32.xlu0 %v780
    %v782 = vpop.xlane.xlu0 %781
    %v783 = vsel %vm166, 0.0, %v772
    %v784 = vsel %vm166, 0.0, %v774
    %v785 = vsel %vm230, %v783, 0.0
    %786 = vadd.xlane.f32.xlu0 %v785
    %v787 = vpop.xlane.xlu0 %786
    %v788 = vsel %vm230, %v784, 0.0
    %789 = vadd.xlane.f32.xlu0 %v788
    %v790 = vpop.xlane.xlu0 %789
    %s791 = sld [smem:[#allocation9 + $0x3]]
    %v792 = vrcp.pop %v787
    %v793 = vrcp.pop %v790
    %v794 = vstv %s791
    %v795 = vmul.f32 %v794, %v792
    %v796 = vmul.f32 %v794, %v793
    %v797 = vrcp.pop %v779
    %v798 = vrcp.pop %v782
    %v799 = vsel %vm166, %v797, %v795
    %v800 = vsel %vm166, %v798, %v796
    %v801 = vmul.f32 %v772, %v799
    %v802 = vmul.f32 %v774, %v800
    %803 = vrot.lane.b32.xlu0 %v116, 72
    %v804 = vpop.permute.xlu0 %803
    %805 = vrot.lane.b32.xlu0 %v151, 72
    %v806 = vpop.permute.xlu0 %805
    %v810 = vsel %vm230, %v801, 0
    %812 = vmatpush.msra.mxu0 0.0
    %813 = vmatpush.msra.mxu0 0.0
    %814 = vmatpush.msra.mxu0 0.0
    %815 = vmatpush.msra.mxu0 0.0
    %816 = vmatpush.msra.mxu0 0.0
    %817 = vmatpush.msra.mxu0 0.0
    %818 = vmatpush.msra.mxu0 0.0
    %819 = vmatpush.msra.mxu0 0.0
    %820 = vmatpush.msra.mxu0 0.0
    %821 = vmatpush.msra.mxu0 0.0
    %822 = vmatpush.msra.mxu0 0.0
    %823 = vmatpush.msra.mxu0 0.0
    %824 = vmatpush.msra.mxu0 0.0
    %825 = vmatpush.msra.mxu0 0.0
    %826 = vmatpush.msra.mxu0 %v806
    %827 = vmatpush.msra.mxu0 %v804
    %828 = vmatmul.f32.gmra.mxu0 %v810
    %v829 = vpop.f32.mrf.mxu0
    %v830 = vadd.f32 0.0, %v829
    %831 = vdwg.mxu0
    %832 = vrot.lane.b32.xlu0 %v119, 72
    %v833 = vpop.permute.xlu0 %832
    %834 = vrot.lane.b32.xlu0 %v154, 72
    %v835 = vpop.permute.xlu0 %834
    %v839 = vsel %vm230, %v802, 0
    %841 = vmatpush.msra.mxu0 0.0
    %842 = vmatpush.msra.mxu0 0.0
    %843 = vmatpush.msra.mxu0 0.0
    %844 = vmatpush.msra.mxu0 0.0
    %845 = vmatpush.msra.mxu0 0.0
    %846 = vmatpush.msra.mxu0 0.0
    %847 = vmatpush.msra.mxu0 0.0
    %848 = vmatpush.msra.mxu0 0.0
    %849 = vmatpush.msra.mxu0 0.0
    %850 = vmatpush.msra.mxu0 0.0
    %851 = vmatpush.msra.mxu0 0.0
    %852 = vmatpush.msra.mxu0 0.0
    %853 = vmatpush.msra.mxu0 0.0
    %854 = vmatpush.msra.mxu0 0.0
    %855 = vmatpush.msra.mxu0 %v835
    %856 = vmatpush.msra.mxu0 %v833
    %857 = vmatmul.f32.gmra.mxu0 %v839
    %v858 = vpop.f32.mrf.mxu0
    %v859 = vadd.f32 0.0, %v858
    %860 = vdwg.mxu0
    %863 = vrot.lane.b32.xlu0 %v482, 8
    %v864 = vpop.permute.xlu0 %863
    %865 = vrot.lane.b32.xlu0 %v511, 8
    %v866 = vpop.permute.xlu0 %865
    %871 = vrot.lane.b32.xlu0 %v656, 16
    %v872 = vpop.permute.xlu0 %871
    %873 = vrot.lane.b32.xlu0 %v685, 16
    %v874 = vpop.permute.xlu0 %873
    %879 = vrot.lane.b32.xlu0 %v830, 24
    %v880 = vpop.permute.xlu0 %879
    %881 = vrot.lane.b32.xlu0 %v859, 24
    %v882 = vpop.permute.xlu0 %881
    %v885 = vsel %vm170, %v308, %v864
    %v886 = vsel %vm170, %v337, %v866
    %v887 = vsel %vm230, %v885, %v872
    %v888 = vsel %vm230, %v886, %v874
    %vm889 = vcmask 195584
    %v890 = vsel %vm889, %v887, %v880
    %v891 = vsel %vm889, %v888, %v882
    %892 = vst.msk [vmem:[#allocation10] sm:$0xff] %vm91, %v890
    %893 = vst.msk [vmem:[#allocation10 + $0x8] sm:$0xff] %vm91, %v891
    // Predicated region
    $region38: #{tpu_custom_call.1} parent=1 // pred_check
      _
    $region39: #{tpu_custom_call.1} parent=1 // pred_check_branch
      %895 = sbr.rel (0) target = $region41
    $region40: #{tpu_custom_call.1} parent=1 // pred_region
      %897 = vsyncadd [#allocation4], 0
      %s898 = sshll.u32 [#allocation10], 4
      %s899 = int_to_ptr.vmem [resolvable:$true] %s898
      %s900 = sshll.u32 %s5, 4
      %s901 = int_to_ptr.hbm [resolvable:$true] %s900
      %906 = dma.vmem_to_hbm [thread:$0]  %s899, 256, %s901, [#allocation4], 128, 128, 8
    $region41: #{tpu_custom_call.1} parent=1 // pred_fallthru
      _
    // Predicated region
    $region42: #{tpu_custom_call.1} parent=1 // pred_check
      _
    $region43: #{tpu_custom_call.1} parent=1 // pred_check_branch
      %908 = sbr.rel (0) target = $region45
    $region44: #{tpu_custom_call.1} parent=1 // pred_region
      %910 = dma.done [#allocation4], 256
    $region45: #{tpu_custom_call.1} parent=1 // pred_fallthru
      _
    %911 = vsyncpa [#allocation3], 1
    %912 = vsyncpa [#allocation7], 1
    %913 = vsyncpa [#allocation4], 1
    %914 = vsyncpa [#allocation5], 1

</llo_original>
